<compile_context>
chip_gen: v7x
topology: tpu7x:2x2x1
jax: 0.10.0
libtpu: 0.0.40
codegen_flags: <defaults>
</compile_context>

<pallas_src>
import jax
import jax.numpy as jnp
from jax.experimental import pallas as pl
from jax.experimental.pallas import tpu as pltpu


def _round_up(x, m):
    return ((x + m - 1) // m) * m


# dtype itemsize -> minimum sublane multiple for the second-to-last dim
_SUBLANE_FOR_ITEMSIZE = {4: 8, 2: 16, 1: 32}


def _vmem_capacity_bytes():
    """Physical VMEM of the current TPU generation (conservative fallback)."""
    try:
        info = pltpu.get_tpu_info()
        cap = getattr(info, "vmem_capacity_bytes", None)
        if cap:
            return int(cap)
    except Exception:
        pass
    return 64 * 1024 * 1024  # v7x per-TC VMEM; safe lower bound for v5e/v6e


def _vmem_usage(tm, ti, H, act_b, w_b, out_b, wbufs):
    """Estimated VMEM bytes for one pipelined grid step (worst case: f32 acc)."""
    u = 2 * tm * H * act_b            # x tile (double-buffered)
    u += wbufs * H * ti * w_b         # gate_proj tile
    u += wbufs * H * ti * w_b         # up_proj tile
    u += wbufs * ti * H * w_b         # down_proj tile
    u += 2 * tm * H * out_b           # output tile
    u += tm * H * 4                   # f32 accumulator (worst case)
    return u


def _select_ti(H, I, w_dtype, act_dtype, vmem_limit, tm_max=512):
    """Intermediate-dim tile, chosen once per layer against the VMEM budget."""
    w_b = jnp.dtype(w_dtype).itemsize
    act_b = jnp.dtype(act_dtype).itemsize
    budget = int(vmem_limit * 0.8)
    i_full = I if I <= 128 else _round_up(I, 128)
    # Prefer full-I (weights streamed exactly once), then 256-multiples (MXU-wide).
    cands = [i_full] + [c for c in (2048, 1024, 512, 256, 128) if c < i_full]
    for ti in cands:
        if _vmem_usage(tm_max, ti, H, act_b, w_b, act_b, 2) <= budget:
            return ti
    return cands[-1]


def _block_spec(shape, index_map, bufs=2):
    """BlockSpec with optional deeper buffering (falls back if unsupported)."""
    if bufs != 2:
        try:
            return pl.BlockSpec(shape, index_map, pipeline_mode=pl.Buffered(bufs))
        except TypeError:
            pass
    return pl.BlockSpec(shape, index_map)


# ----------------------------------------------------------------------------
# Pallas kernels: one (token-tile i, intermediate-tile k) step of the fused MLP
# ----------------------------------------------------------------------------
def _mlp_kernel_acc(x_ref, wg_ref, wu_ref, wd_ref, o_ref, acc_ref):
    # x_ref:  (TM, H)   token tile (same block for every k)
    # wg_ref: (H, TI)   gate_proj^T tile k     wu_ref: (H, TI) up_proj^T tile k
    # wd_ref: (TI, H)   down_proj^T tile k
    # o_ref:  (TM, H)   output tile (resident across the k axis)
    # acc_ref:(TM, H)   f32 VMEM accumulator
    k = pl.program_id(1)

    @pl.when(k == 0)
    def _init():
        acc_ref[...] = jnp.zeros_like(acc_ref)

    x = x_ref[...]
    gate = jnp.dot(x, wg_ref[...], preferred_element_type=jnp.float32)
    up = jnp.dot(x, wu_ref[...], preferred_element_type=jnp.float32)
    h = (gate * jax.nn.sigmoid(gate)) * up                  # SiLU(gate) * up (f32)
    acc_ref[...] += jnp.dot(h.astype(wd_ref.dtype), wd_ref[...],
                            preferred_element_type=jnp.float32)

    @pl.when(k == pl.num_programs(1) - 1)
    def _finalize():
        o_ref[...] = acc_ref[...].astype(o_ref.dtype)


def _mlp_kernel_f32out(x_ref, wg_ref, wu_ref, wd_ref, o_ref):
    # f32 output: accumulate directly into o_ref (saves TM*H*4 bytes of VMEM).
    k = pl.program_id(1)

    @pl.when(k == 0)
    def _init():
        o_ref[...] = jnp.zeros_like(o_ref)

    x = x_ref[...]
    gate = jnp.dot(x, wg_ref[...], preferred_element_type=jnp.float32)
    up = jnp.dot(x, wu_ref[...], preferred_element_type=jnp.float32)
    h = (gate * jax.nn.sigmoid(gate)) * up
    o_ref[...] += jnp.dot(h.astype(wd_ref.dtype), wd_ref[...],
                          preferred_element_type=jnp.float32)


# ----------------------------------------------------------------------------
# Fused MLP over a flat [T, H] slab of tokens (weights already prepared/padded)
# ----------------------------------------------------------------------------
def _llama_mlp_2d(x2d, wg, wu, wd, *, ti, vmem_limit, tm=None):
    T, H = x2d.shape
    I_pad = wg.shape[1]
    assert I_pad % ti == 0 or I_pad == ti
    nk = max(I_pad // ti, 1)

    act_b = jnp.dtype(x2d.dtype).itemsize
    w_b = jnp.dtype(wg.dtype).itemsize
    out_dtype = x2d.dtype
    out_b = act_b
    sub = _SUBLANE_FOR_ITEMSIZE.get(act_b, 8)
    budget = int(vmem_limit * 0.8)

    # Token tile: single tile for small T (decode), else the largest MXU-M tile
    # that fits the VMEM budget (bigger TM => weights re-streamed fewer times).
    if tm is None:
        if T <= 256:
            tm = _round_up(max(T, 1), sub)
        else:
            tm = 128
            for cand in (512, 256, 128):
                if _vmem_usage(cand, ti, H, act_b, w_b, out_b, 2) <= budget:
                    tm = cand
                    break

    T_pad = _round_up(T, tm)
    if T_pad != T:
        x2d = jnp.pad(x2d, ((0, T_pad - T), (0, 0)))
    n_tok_tiles = T_pad // tm

    # Decode / single-token-tile path is weight-BW bound: triple-buffer the
    # weight streams if the (tiny) tiles leave VMEM headroom.
    wbufs = 2
    if (n_tok_tiles == 1 and nk >= 3
            and _vmem_usage(tm, ti, H, act_b, w_b, out_b, 3) <= budget):
        wbufs = 3

    use_acc = jnp.dtype(out_dtype) != jnp.dtype(jnp.float32)
    kernel = _mlp_kernel_acc if use_acc else _mlp_kernel_f32out
    scratch = [pltpu.VMEM((tm, H), jnp.float32)] if use_acc else []

    cost = pl.CostEstimate(
        flops=int(6 * T_pad * H * I_pad),        # gate+up (4*T*H*I) + down (2*T*I*H)
        transcendentals=int(T_pad * I_pad),      # sigmoid
        bytes_accessed=int((wg.size + wu.size + wd.size) * w_b * n_tok_tiles
                           + x2d.size * act_b + T_pad * H * out_b),
    )

    out = pl.pallas_call(
        kernel,
        out_shape=jax.ShapeDtypeStruct((T_pad, H), out_dtype),
        grid_spec=pltpu.PrefetchScalarGridSpec(
            num_scalar_prefetch=0,
            grid=(n_tok_tiles, nk),                              # tokens x I-tiles
            in_specs=[
                pl.BlockSpec((tm, H), lambda i, k: (i, 0)),      # token tile
                _block_spec((H, ti), lambda i, k: (0, k), wbufs),  # gate tile
                _block_spec((H, ti), lambda i, k: (0, k), wbufs),  # up tile
                _block_spec((ti, H), lambda i, k: (k, 0), wbufs),  # down tile
            ],
            out_specs=pl.BlockSpec((tm, H), lambda i, k: (i, 0)),
            scratch_shapes=scratch,
        ),
        compiler_params=pltpu.CompilerParams(
            dimension_semantics=("parallel", "arbitrary"),
            vmem_limit_bytes=int(vmem_limit),
        ),
        cost_estimate=cost,
    )(x2d, wg, wu, wd)

    return out[:T]


# ----------------------------------------------------------------------------
# Weight preparation (once, at load time) + forward closure
# ----------------------------------------------------------------------------
def make_llama_mlp(wg, wu, wd, *, weight_dtype=None, act_dtype=None, ti=None):
    """Prepare (cast + pad) LlamaMLP weights ONCE and return forward(x, ...).

    wg, wu: [H, I]  gate_proj^T / up_proj^T   wd: [I, H]  down_proj^T
    (PyTorch Linear stores [out, in]; pass the transposed weights.)
    """
    H, I = wg.shape
    assert wu.shape == (H, I) and wd.shape == (I, H)

    if weight_dtype is not None:
        wg, wu, wd = (wg.astype(weight_dtype), wu.astype(weight_dtype),
                      wd.astype(weight_dtype))
    w_dtype = wg.dtype
    a_dtype = act_dtype if act_dtype is not None else w_dtype

    vmem_limit = int(_vmem_capacity_bytes() * 0.85)   # headroom for compiler scratch
    if ti is None:
        ti = _select_ti(H, I, w_dtype, a_dtype, vmem_limit)

    I_pad = _round_up(I, ti)
    if I_pad != I:
        # Zero-padded I columns give SiLU(0)*0 = 0 and zero down_proj rows,
        # so padding cannot change results.  Done once, not per call.
        wg = jnp.pad(wg, ((0, 0), (0, I_pad - I)))
        wu = jnp.pad(wu, ((0, 0), (0, I_pad - I)))
        wd = jnp.pad(wd, ((0, I_pad - I), (0, 0)))

    def forward(x, is_final_mlp=False, mini_s=8, chunk_size=4096, chunk_mode=True):
        """x: [B, S, H] -> [B, S, H] (or [B, 1, H] when is_final_mlp)."""
        B, S, Hx = x.shape
        assert Hx == H
        if is_final_mlp:
            # forcibly slice out the last token [B, 1, d] (decode path)
            x = x[:, -1:, :]
            S = 1
        # The torch wrapper's MST sequence chunking is pure glue for a
        # token-wise MLP; folding every token into one pallas grid streams each
        # weight from HBM once per token tile instead of once per chunk.
        # mini_s / chunk_size / chunk_mode kept for API parity.
        del mini_s, chunk_size, chunk_mode
        out2d = _llama_mlp_2d(x.reshape(B * S, H), wg, wu, wd,
                              ti=ti, vmem_limit=vmem_limit)
        return out2d.reshape(B, S, H)

    # TODO(synk): v7x decode (single token tile) leaves the second TensorCore
    # idle; splitting the weight streams across both cores (pl.core_map) would
    # roughly double achieved HBM bandwidth for the is_final_mlp path.
    return forward


def llama_mlp_inference_wrapper(x, wg, wu, wd, *, mini_s=8, chunk_size=4096,
                                chunk_mode=True, is_final_mlp=False):
    """One-shot convenience mirroring LlamaMLPInferenceWrapper.forward.
    Production code should call make_llama_mlp() once per layer instead."""
    fwd = make_llama_mlp(wg, wu, wd, act_dtype=x.dtype)
    return fwd(x, is_final_mlp=is_final_mlp, mini_s=mini_s,
               chunk_size=chunk_size, chunk_mode=chunk_mode)


# ----------------------------------------------------------------------------
# Pure-JAX reference for validation
# ----------------------------------------------------------------------------
def _ref_mlp(x, wg, wu, wd):
    gate = x @ wg
    up = x @ wu
    return (jax.nn.silu(gate) * up) @ wd


if __name__ == "__main__":
    key = jax.random.PRNGKey(0)

    # --- small f32 shapes consistent with the module -----------------------
    B, S, H, I = 2, 8, 32, 64
    kx, kg, ku, kd, k2 = jax.random.split(key, 5)
    x = jax.random.normal(kx, (B, S, H), dtype=jnp.float32)
    wg = jax.random.normal(kg, (H, I), dtype=jnp.float32) * 0.05   # gate_proj^T
    wu = jax.random.normal(ku, (H, I), dtype=jnp.float32) * 0.05   # up_proj^T
    wd = jax.random.normal(kd, (I, H), dtype=jnp.float32) * 0.05   # down_proj^T

    mlp = make_llama_mlp(wg, wu, wd)                 # weights prepared once
    out = jax.block_until_ready(mlp(x))              # prefill path
    out_final = jax.block_until_ready(mlp(x, is_final_mlp=True))  # decode path

    ref = _ref_mlp(x, wg, wu, wd)
    assert out.shape == (B, S, H)
    assert out_final.shape == (B, 1, H)
    assert jnp.allclose(out, ref, atol=1e-4, rtol=1e-4)
    assert jnp.allclose(out_final, ref[:, -1:, :], atol=1e-4, rtol=1e-4)

    # --- stress: bf16 end-to-end, multi token tile + multi I-tile reduction --
    B2, S2, H2, I2 = 2, 160, 128, 320     # T=320 -> TM=512 (padded), ti=128 -> nk=3
    kx2, kg2, ku2, kd2 = jax.random.split(k2, 4)
    x2 = (jax.random.normal(kx2, (B2, S2, H2), dtype=jnp.float32) * 1.0).astype(jnp.bfloat16)
    wg2 = (jax.random.normal(kg2, (H2, I2), dtype=jnp.float32) * 0.05).astype(jnp.bfloat16)
    wu2 = (jax.random.normal(ku2, (H2, I2), dtype=jnp.float32) * 0.05).astype(jnp.bfloat16)
    wd2 = (jax.random.normal(kd2, (I2, H2), dtype=jnp.float32) * 0.05).astype(jnp.bfloat16)

    mlp2 = make_llama_mlp(wg2, wu2, wd2, ti=128)
    out2 = jax.block_until_ready(mlp2(x2))                          # prefill, acc kernel
    out2_final = jax.block_until_ready(mlp2(x2, is_final_mlp=True)) # decode, Buffered(3)

    ref2 = _ref_mlp(x2.astype(jnp.float32).reshape(B2 * S2, H2),
                    wg2.astype(jnp.float32), wu2.astype(jnp.float32),
                    wd2.astype(jnp.float32)).reshape(B2, S2, H2)
    assert out2.shape == (B2, S2, H2)
    assert out2_final.shape == (B2, 1, H2)
    # bf16 intermediate rounding (h cast + output cast) -> loose tolerance.
    assert jnp.allclose(out2.astype(jnp.float32), ref2, atol=3e-2, rtol=3e-2)
    assert jnp.allclose(out2_final.astype(jnp.float32), ref2[:, -1:, :],
                        atol=3e-2, rtol=3e-2)

    print("KERNEL_OK")
</pallas_src>

<mosaic_0001>
module attributes {stable_mosaic.version = 11 : i64} {
  func.func @_mlp_kernel_f32out(%arg0: i32, %arg1: i32, %arg2: memref<16x32xf32, #tpu.memory_space<vmem>>, %arg3: memref<32x64xf32, #tpu.memory_space<vmem>>, %arg4: memref<32x64xf32, #tpu.memory_space<vmem>>, %arg5: memref<64x32xf32, #tpu.memory_space<vmem>>, %arg6: memref<16x32xf32, #tpu.memory_space<vmem>>) attributes {dimension_semantics = [#tpu.dimension_semantics<parallel>, #tpu.dimension_semantics<arbitrary>], iteration_bounds = array<i64: 1, 1>, scalar_prefetch = 0 : i64, scratch_operands = 0 : i64, tpu.core_type = #tpu.core_type<tc>, window_params = [{transform_indices = @transform_0, window_bounds = array<i64: 16, 32>}, {transform_indices = @transform_1, window_bounds = array<i64: 32, 64>}, {transform_indices = @transform_2, window_bounds = array<i64: 32, 64>}, {transform_indices = @transform_3, window_bounds = array<i64: 64, 32>}, {transform_indices = @transform_4, window_bounds = array<i64: 16, 32>}]} {
    %c0_i32 = arith.constant 0 : i32
    %0 = arith.cmpi eq, %arg1, %c0_i32 : i32
    %1 = arith.extui %0 : i1 to i32
    %c0_i32_0 = arith.constant 0 : i32
    %2 = arith.cmpi ne, %1, %c0_i32_0 : i32
    scf.if %2 {
      %cst_15 = arith.constant 0.000000e+00 : f32
      %20 = vector.broadcast %cst_15 : f32 to vector<16x32xf32>
      %c0_16 = arith.constant 0 : index
      %c0_17 = arith.constant 0 : index
      %21 = vector.load %arg6[%c0_16, %c0_17] : memref<16x32xf32, #tpu.memory_space<vmem>>, vector<16x32xf32>
      tpu.vector_store %arg6[%c0_16, %c0_17], %20 {strides = array<i32>} : memref<16x32xf32, #tpu.memory_space<vmem>>, vector<16x32xf32>,
    } else {
    }
    %c0 = arith.constant 0 : index
    %c0_1 = arith.constant 0 : index
    %3 = vector.load %arg2[%c0, %c0_1] : memref<16x32xf32, #tpu.memory_space<vmem>>, vector<16x32xf32>
    %c0_2 = arith.constant 0 : index
    %c0_3 = arith.constant 0 : index
    %4 = vector.load %arg3[%c0_2, %c0_3] : memref<32x64xf32, #tpu.memory_space<vmem>>, vector<32x64xf32>
    %cst = arith.constant dense<0.000000e+00> : vector<16x64xf32>
    %5 = tpu.matmul %3, %4, %cst {dimension_numbers = #tpu.dot_dimension_numbers<[1], [0], [0], [1], [0, 0, 1, 1], [], []>} : vector<16x32xf32>, vector<32x64xf32>, vector<16x64xf32> -> vector<16x64xf32>
    %c0_4 = arith.constant 0 : index
    %c0_5 = arith.constant 0 : index
    %6 = vector.load %arg4[%c0_4, %c0_5] : memref<32x64xf32, #tpu.memory_space<vmem>>, vector<32x64xf32>
    %cst_6 = arith.constant dense<0.000000e+00> : vector<16x64xf32>
    %7 = tpu.matmul %3, %6, %cst_6 {dimension_numbers = #tpu.dot_dimension_numbers<[1], [0], [0], [1], [0, 0, 1, 1], [], []>} : vector<16x32xf32>, vector<32x64xf32>, vector<16x64xf32> -> vector<16x64xf32>
    %8 = arith.negf %5 : vector<16x64xf32>
    %9 = math.exp %8 : vector<16x64xf32>
    %cst_7 = arith.constant 1.000000e+00 : f32
    %10 = vector.broadcast %cst_7 : f32 to vector<16x64xf32>
    %11 = arith.addf %10, %9 : vector<16x64xf32>
    %12 = arith.divf %10, %11 : vector<16x64xf32>
    %13 = arith.mulf %5, %12 : vector<16x64xf32>
    %14 = arith.mulf %13, %7 : vector<16x64xf32>
    %c0_8 = arith.constant 0 : index
    %c0_9 = arith.constant 0 : index
    %15 = vector.load %arg6[%c0_8, %c0_9] : memref<16x32xf32, #tpu.memory_space<vmem>>, vector<16x32xf32>
    %c0_10 = arith.constant 0 : index
    %c0_11 = arith.constant 0 : index
    %16 = vector.load %arg5[%c0_10, %c0_11] : memref<64x32xf32, #tpu.memory_space<vmem>>, vector<64x32xf32>
    %cst_12 = arith.constant dense<0.000000e+00> : vector<16x32xf32>
    %17 = tpu.matmul %14, %16, %cst_12 {dimension_numbers = #tpu.dot_dimension_numbers<[1], [0], [0], [1], [0, 0, 1, 1], [], []>} : vector<16x64xf32>, vector<64x32xf32>, vector<16x32xf32> -> vector<16x32xf32>
    %18 = arith.addf %15, %17 : vector<16x32xf32>
    %c0_13 = arith.constant 0 : index
    %c0_14 = arith.constant 0 : index
    %19 = vector.load %arg6[%c0_13, %c0_14] : memref<16x32xf32, #tpu.memory_space<vmem>>, vector<16x32xf32>
    tpu.vector_store %arg6[%c0_13, %c0_14], %18 {strides = array<i32>} : memref<16x32xf32, #tpu.memory_space<vmem>>, vector<16x32xf32>,
    return
  }
  func.func @transform_0(%arg0: i32, %arg1: i32) -> (i32, i32) {
    %c0_i32 = arith.constant 0 : i32
    %c0_i32_0 = arith.constant 0 : i32
    return %arg0, %c0_i32 : i32, i32
  }
  func.func @transform_1(%arg0: i32, %arg1: i32) -> (i32, i32) {
    %c0_i32 = arith.constant 0 : i32
    %c0_i32_0 = arith.constant 0 : i32
    return %c0_i32, %arg1 : i32, i32
  }
  func.func @transform_2(%arg0: i32, %arg1: i32) -> (i32, i32) {
    %c0_i32 = arith.constant 0 : i32
    %c0_i32_0 = arith.constant 0 : i32
    return %c0_i32, %arg1 : i32, i32
  }
  func.func @transform_3(%arg0: i32, %arg1: i32) -> (i32, i32) {
    %c0_i32 = arith.constant 0 : i32
    %c0_i32_0 = arith.constant 0 : i32
    return %arg1, %c0_i32 : i32, i32
  }
  func.func @transform_4(%arg0: i32, %arg1: i32) -> (i32, i32) {
    %c0_i32 = arith.constant 0 : i32
    %c0_i32_0 = arith.constant 0 : i32
    return %arg0, %c0_i32 : i32, i32
  }
}

</mosaic_0001>

<llo_original>
// kernel: tpu_custom_call.1
$region0: #{tpu_custom_call.1}
  #allocation0 [shape = 'u32[]', space=smem, size = 0x4, offset = 0x4, fixed_abs, tag = 'smem constant byte address 0x4 - core index']
  #allocation1 [shape = 'u32[144,128]{1,0:T(1,128)}', space=vmem, size = 0x12000, scoped, tag = 'internal scratch']
  %s0 = inlined_call_operand.vmem [shape: f32[16,32], index: 0, kind: input, shape index: {}]
  %s1 = inlined_call_operand.vmem [shape: f32[32,64], index: 1, kind: input, shape index: {}]
  %s2 = inlined_call_operand.vmem [shape: f32[32,64], index: 2, kind: input, shape index: {}]
  %s3 = inlined_call_operand.vmem [shape: f32[64,32], index: 3, kind: input, shape index: {}]
  %s4 = inlined_call_operand.hbm [shape: f32[16,32], index: 4, kind: output, shape index: {}]
  %s5 = sld [smem:[#allocation0]]
  $region30: #{tpu_custom_call.1} parent=0
    _
  %s7 = ssub.s32 1, %s5
  %s8 = scalar_select 0, %s7, %s5
  $region1: #{tpu_custom_call.1} parent=0
    #allocation2 [shape = 'u8[8192]{0}', space=vmem, size = 0x2000, scoped, tag = 'output window, operand 0, single buffered']
    #allocation3 [shape = 's32[1]{0}', space=sflag, size = 0x4, scoped, tag = 'scoped memory for tpu_custom_call.1']
    %9 = vsyncpa [#allocation3], 0
    // Predicated region
    $region2: #{tpu_custom_call.1} parent=1 // pred_check
      _
    $region3: #{tpu_custom_call.1} parent=1 // pred_check_branch
      %11 = sbr.rel (0) target = $region5
    $region4: #{tpu_custom_call.1} parent=1 // pred_region
      _
    $region5: #{tpu_custom_call.1} parent=1 // pred_fallthru
      _
    // Predicated region
    $region6: #{tpu_custom_call.1} parent=1 // pred_check
      _
    $region7: #{tpu_custom_call.1} parent=1 // pred_check_branch
      %13 = sbr.rel (0) target = $region9
    $region8: #{tpu_custom_call.1} parent=1 // pred_region
      _
    $region9: #{tpu_custom_call.1} parent=1 // pred_fallthru
      _
    // Predicated region
    $region10: #{tpu_custom_call.1} parent=1 // pred_check
      _
    $region11: #{tpu_custom_call.1} parent=1 // pred_check_branch
      %15 = sbr.rel (0) target = $region13
    $region12: #{tpu_custom_call.1} parent=1 // pred_region
      _
    $region13: #{tpu_custom_call.1} parent=1 // pred_fallthru
      _
    // Predicated region
    $region14: #{tpu_custom_call.1} parent=1 // pred_check
      _
    $region15: #{tpu_custom_call.1} parent=1 // pred_check_branch
      %17 = sbr.rel (0) target = $region17
    $region16: #{tpu_custom_call.1} parent=1 // pred_region
      _
    $region17: #{tpu_custom_call.1} parent=1 // pred_fallthru
      _
    %p18 = scmp.eq.s32.totalorder 0, 0
    // Predicated region
    $region18: #{tpu_custom_call.1} parent=1 // pred_check
      %p19 = pneg %p18
    $region19: #{tpu_custom_call.1} parent=1 // pred_check_branch
      %21 = sbr.rel (%p19) target = $region21
    $region20: #{tpu_custom_call.1} parent=1 // pred_region
      %vm22 = vcmask 261120
      %23 = vst.msk [vmem:[#allocation2] sm:$0xff] %vm22, 0.0
      %24 = vst.msk [vmem:[#allocation2 + $0x8] sm:$0xff] %vm22, 0.0
    $region21: #{tpu_custom_call.1} parent=1 // pred_fallthru
      _
    %v25 = vld [vmem:[%s0] sm:$0xff]
    %v26 = vld [vmem:[%s0 + $0x8] sm:$0xff]
    %v27 = vld [vmem:[%s1] sm:$0xff]
    %v28 = vld [vmem:[%s1 + $0x8] sm:$0xff]
    %v29 = vld [vmem:[%s1 + $0x10] sm:$0xff]
    %v30 = vld [vmem:[%s1 + $0x18] sm:$0xff]
    %vm31 = vcmask 261120
    %v33 = vsel %vm31, %v25, 0
    %v36 = vsel %vm31, %v26, 0
    %38 = vmatprep.subr.mxu0 0.0
    %39 = vmatpush1.msra.mxu0 %v27
    %40 = vmatprep.subr.mxu0 0.0
    %41 = vmatpush1.msra.mxu0 %v28
    %42 = vmatprep.subr.mxu0 0.0
    %43 = vmatpush1.msra.mxu0 %v29
    %44 = vmatprep.subr.mxu0 0.0
    %45 = vmatpush1.msra.mxu0 %v30
    %46 = vmatprep.subr.mxu0 0.0
    %47 = vmatpush1.msra.mxu0 0.0
    %48 = vmatprep.subr.mxu0 0.0
    %49 = vmatpush1.msra.mxu0 0.0
    %50 = vmatprep.subr.mxu0 0.0
    %51 = vmatpush1.msra.mxu0 0.0
    %52 = vmatprep.subr.mxu0 0.0
    %53 = vmatpush1.msra.mxu0 0.0
    %54 = vmatprep.subr.mxu0 0.0
    %55 = vmatpush1.msra.mxu0 0.0
    %56 = vmatprep.subr.mxu0 0.0
    %57 = vmatpush1.msra.mxu0 0.0
    %58 = vmatprep.subr.mxu0 0.0
    %59 = vmatpush1.msra.mxu0 0.0
    %60 = vmatprep.subr.mxu0 0.0
    %61 = vmatpush1.msra.mxu0 0.0
    %62 = vmatprep.subr.mxu0 0.0
    %63 = vmatpush1.msra.mxu0 0.0
    %64 = vmatprep.subr.mxu0 0.0
    %65 = vmatpush1.msra.mxu0 0.0
    %66 = vmatprep.subr.mxu0 0.0
    %67 = vmatpush1.msra.mxu0 0.0
    %68 = vmatprep.subr.mxu0 0.0
    %69 = vmatpush1.msra.mxu0 0.0
    %70 = vmatprep.subr.mxu0 0.0
    %71 = vmatpush1.msra.mxu0 0.0
    %72 = vmatprep.subr.mxu0 0.0
    %73 = vmatpush1.msra.mxu0 0.0
    %74 = vmatprep.subr.mxu0 0.0
    %75 = vmatpush1.msra.mxu0 0.0
    %76 = vmatprep.subr.mxu0 0.0
    %77 = vmatpush1.msra.mxu0 0.0
    %78 = vmatprep.subr.mxu0 0.0
    %79 = vmatpush1.msra.mxu0 0.0
    %80 = vmatprep.subr.mxu0 0.0
    %81 = vmatpush1.msra.mxu0 0.0
    %82 = vmatprep.subr.mxu0 0.0
    %83 = vmatpush1.msra.mxu0 0.0
    %84 = vmatprep.subr.mxu0 0.0
    %85 = vmatpush1.msra.mxu0 0.0
    %86 = vmatprep.subr.mxu0 0.0
    %87 = vmatpush1.msra.mxu0 0.0
    %88 = vmatprep.subr.mxu0 0.0
    %89 = vmatpush1.msra.mxu0 0.0
    %90 = vmatprep.subr.mxu0 0.0
    %91 = vmatpush1.msra.mxu0 0.0
    %92 = vmatprep.subr.mxu0 0.0
    %93 = vmatpush1.msra.mxu0 0.0
    %94 = vmatprep.subr.mxu0 0.0
    %95 = vmatpush1.msra.mxu0 0.0
    %96 = vmatprep.subr.mxu0 0.0
    %97 = vmatpush1.msra.mxu0 0.0
    %98 = vmatprep.subr.mxu0 0.0
    %99 = vmatpush1.msra.mxu0 0.0
    %100 = vmatprep.subr.mxu0 0.0
    %101 = vmatpush1.msra.mxu0 0.0
    %102 = vmatprep.mubr.f32.mxu0 0.0
    %103 = vmatmul.mubr.f32.gmra.mrb[0].mxu0 %v33
    %v104 = vpop.f32.mrb[0].mxu0
    %v105 = vadd.f32 0.0, %v104
    %v106 = vpop.f32.mrb[0].mxu0
    %107 = vmatprep.mubr.f32.mxu0 0.0
    %108 = vmatmul.mubr.f32.gmra.mrb[0].mxu0 %v36
    %v109 = vpop.f32.mrb[0].mxu0
    %v110 = vadd.f32 0.0, %v109
    %v111 = vpop.f32.mrb[0].mxu0
    %112 = vdwg.mxu0
    %v113 = vld [vmem:[%s2] sm:$0xff]
    %v114 = vld [vmem:[%s2 + $0x8] sm:$0xff]
    %v115 = vld [vmem:[%s2 + $0x10] sm:$0xff]
    %v116 = vld [vmem:[%s2 + $0x18] sm:$0xff]
    %117 = vmatprep.subr.mxu0 0.0
    %118 = vmatpush1.msra.mxu0 %v113
    %119 = vmatprep.subr.mxu0 0.0
    %120 = vmatpush1.msra.mxu0 %v114
    %121 = vmatprep.subr.mxu0 0.0
    %122 = vmatpush1.msra.mxu0 %v115
    %123 = vmatprep.subr.mxu0 0.0
    %124 = vmatpush1.msra.mxu0 %v116
    %125 = vmatprep.subr.mxu0 0.0
    %126 = vmatpush1.msra.mxu0 0.0
    %127 = vmatprep.subr.mxu0 0.0
    %128 = vmatpush1.msra.mxu0 0.0
    %129 = vmatprep.subr.mxu0 0.0
    %130 = vmatpush1.msra.mxu0 0.0
    %131 = vmatprep.subr.mxu0 0.0
    %132 = vmatpush1.msra.mxu0 0.0
    %133 = vmatprep.subr.mxu0 0.0
    %134 = vmatpush1.msra.mxu0 0.0
    %135 = vmatprep.subr.mxu0 0.0
    %136 = vmatpush1.msra.mxu0 0.0
    %137 = vmatprep.subr.mxu0 0.0
    %138 = vmatpush1.msra.mxu0 0.0
    %139 = vmatprep.subr.mxu0 0.0
    %140 = vmatpush1.msra.mxu0 0.0
    %141 = vmatprep.subr.mxu0 0.0
    %142 = vmatpush1.msra.mxu0 0.0
    %143 = vmatprep.subr.mxu0 0.0
    %144 = vmatpush1.msra.mxu0 0.0
    %145 = vmatprep.subr.mxu0 0.0
    %146 = vmatpush1.msra.mxu0 0.0
    %147 = vmatprep.subr.mxu0 0.0
    %148 = vmatpush1.msra.mxu0 0.0
    %149 = vmatprep.subr.mxu0 0.0
    %150 = vmatpush1.msra.mxu0 0.0
    %151 = vmatprep.subr.mxu0 0.0
    %152 = vmatpush1.msra.mxu0 0.0
    %153 = vmatprep.subr.mxu0 0.0
    %154 = vmatpush1.msra.mxu0 0.0
    %155 = vmatprep.subr.mxu0 0.0
    %156 = vmatpush1.msra.mxu0 0.0
    %157 = vmatprep.subr.mxu0 0.0
    %158 = vmatpush1.msra.mxu0 0.0
    %159 = vmatprep.subr.mxu0 0.0
    %160 = vmatpush1.msra.mxu0 0.0
    %161 = vmatprep.subr.mxu0 0.0
    %162 = vmatpush1.msra.mxu0 0.0
    %163 = vmatprep.subr.mxu0 0.0
    %164 = vmatpush1.msra.mxu0 0.0
    %165 = vmatprep.subr.mxu0 0.0
    %166 = vmatpush1.msra.mxu0 0.0
    %167 = vmatprep.subr.mxu0 0.0
    %168 = vmatpush1.msra.mxu0 0.0
    %169 = vmatprep.subr.mxu0 0.0
    %170 = vmatpush1.msra.mxu0 0.0
    %171 = vmatprep.subr.mxu0 0.0
    %172 = vmatpush1.msra.mxu0 0.0
    %173 = vmatprep.subr.mxu0 0.0
    %174 = vmatpush1.msra.mxu0 0.0
    %175 = vmatprep.subr.mxu0 0.0
    %176 = vmatpush1.msra.mxu0 0.0
    %177 = vmatprep.subr.mxu0 0.0
    %178 = vmatpush1.msra.mxu0 0.0
    %179 = vmatprep.subr.mxu0 0.0
    %180 = vmatpush1.msra.mxu0 0.0
    %181 = vmatprep.mubr.f32.mxu0 0.0
    %182 = vmatmul.mubr.f32.gmra.mrb[0].mxu0 %v33
    %v183 = vpop.f32.mrb[0].mxu0
    %v184 = vadd.f32 0.0, %v183
    %v185 = vpop.f32.mrb[0].mxu0
    %186 = vmatprep.mubr.f32.mxu0 0.0
    %187 = vmatmul.mubr.f32.gmra.mrb[0].mxu0 %v36
    %v188 = vpop.f32.mrb[0].mxu0
    %v189 = vadd.f32 0.0, %v188
    %v190 = vpop.f32.mrb[0].mxu0
    %191 = vdwg.mxu0
    %v192 = vxor.u32 %v105, 2147483648
    %v193 = vxor.u32 %v110, 2147483648
    %v194 = vmul.f32 %v192, 1.442695
    %v195 = vpow.pop %v194
    %v196 = vmul.f32 %v193, 1.442695
    %v197 = vpow.pop %v196
    %v198 = vadd.f32 %v195, 1.0
    %v199 = vadd.f32 %v197, 1.0
    %v200 = vrcp.pop %v198
    %v201 = vmul.f32 1.0, %v200
    %v202 = vrcp.pop %v199
    %v203 = vmul.f32 1.0, %v202
    %v204 = vmul.f32 %v105, %v201
    %v205 = vmul.f32 %v110, %v203
    %v206 = vmul.f32 %v204, %v184
    %v207 = vmul.f32 %v205, %v189
    %v208 = vld [vmem:[#allocation2] sm:$0xff]
    %v209 = vld [vmem:[#allocation2 + $0x8] sm:$0xff]
    %v210 = vld [vmem:[%s3] sm:$0xff]
    %v211 = vld [vmem:[%s3 + $0x8] sm:$0xff]
    %v212 = vld [vmem:[%s3 + $0x10] sm:$0xff]
    %v213 = vld [vmem:[%s3 + $0x18] sm:$0xff]
    %v214 = vld [vmem:[%s3 + $0x20] sm:$0xff]
    %v215 = vld [vmem:[%s3 + $0x28] sm:$0xff]
    %v216 = vld [vmem:[%s3 + $0x30] sm:$0xff]
    %v217 = vld [vmem:[%s3 + $0x38] sm:$0xff]
    %vm218 = vcmask 523264
    %v220 = vsel %vm218, %v206, 0
    %v223 = vsel %vm218, %v207, 0
    %225 = vmatprep.subr.mxu0 0.0
    %226 = vmatpush1.msra.mxu0 %v210
    %227 = vmatprep.subr.mxu0 0.0
    %228 = vmatpush1.msra.mxu0 %v211
    %229 = vmatprep.subr.mxu0 0.0
    %230 = vmatpush1.msra.mxu0 %v212
    %231 = vmatprep.subr.mxu0 0.0
    %232 = vmatpush1.msra.mxu0 %v213
    %233 = vmatprep.subr.mxu0 0.0
    %234 = vmatpush1.msra.mxu0 %v214
    %235 = vmatprep.subr.mxu0 0.0
    %236 = vmatpush1.msra.mxu0 %v215
    %237 = vmatprep.subr.mxu0 0.0
    %238 = vmatpush1.msra.mxu0 %v216
    %239 = vmatprep.subr.mxu0 0.0
    %240 = vmatpush1.msra.mxu0 %v217
    %241 = vmatprep.subr.mxu0 0.0
    %242 = vmatpush1.msra.mxu0 0.0
    %243 = vmatprep.subr.mxu0 0.0
    %244 = vmatpush1.msra.mxu0 0.0
    %245 = vmatprep.subr.mxu0 0.0
    %246 = vmatpush1.msra.mxu0 0.0
    %247 = vmatprep.subr.mxu0 0.0
    %248 = vmatpush1.msra.mxu0 0.0
    %249 = vmatprep.subr.mxu0 0.0
    %250 = vmatpush1.msra.mxu0 0.0
    %251 = vmatprep.subr.mxu0 0.0
    %252 = vmatpush1.msra.mxu0 0.0
    %253 = vmatprep.subr.mxu0 0.0
    %254 = vmatpush1.msra.mxu0 0.0
    %255 = vmatprep.subr.mxu0 0.0
    %256 = vmatpush1.msra.mxu0 0.0
    %257 = vmatprep.subr.mxu0 0.0
    %258 = vmatpush1.msra.mxu0 0.0
    %259 = vmatprep.subr.mxu0 0.0
    %260 = vmatpush1.msra.mxu0 0.0
    %261 = vmatprep.subr.mxu0 0.0
    %262 = vmatpush1.msra.mxu0 0.0
    %263 = vmatprep.subr.mxu0 0.0
    %264 = vmatpush1.msra.mxu0 0.0
    %265 = vmatprep.subr.mxu0 0.0
    %266 = vmatpush1.msra.mxu0 0.0
    %267 = vmatprep.subr.mxu0 0.0
    %268 = vmatpush1.msra.mxu0 0.0
    %269 = vmatprep.subr.mxu0 0.0
    %270 = vmatpush1.msra.mxu0 0.0
    %271 = vmatprep.subr.mxu0 0.0
    %272 = vmatpush1.msra.mxu0 0.0
    %273 = vmatprep.subr.mxu0 0.0
    %274 = vmatpush1.msra.mxu0 0.0
    %275 = vmatprep.subr.mxu0 0.0
    %276 = vmatpush1.msra.mxu0 0.0
    %277 = vmatprep.subr.mxu0 0.0
    %278 = vmatpush1.msra.mxu0 0.0
    %279 = vmatprep.subr.mxu0 0.0
    %280 = vmatpush1.msra.mxu0 0.0
    %281 = vmatprep.subr.mxu0 0.0
    %282 = vmatpush1.msra.mxu0 0.0
    %283 = vmatprep.subr.mxu0 0.0
    %284 = vmatpush1.msra.mxu0 0.0
    %285 = vmatprep.subr.mxu0 0.0
    %286 = vmatpush1.msra.mxu0 0.0
    %287 = vmatprep.subr.mxu0 0.0
    %288 = vmatpush1.msra.mxu0 0.0
    %289 = vmatprep.mubr.f32.mxu0 0.0
    %290 = vmatmul.mubr.f32.gmra.mrb[0].mxu0 %v220
    %v291 = vpop.f32.mrb[0].mxu0
    %v292 = vadd.f32 0.0, %v291
    %v293 = vpop.f32.mrb[0].mxu0
    %294 = vmatprep.mubr.f32.mxu0 0.0
    %295 = vmatmul.mubr.f32.gmra.mrb[0].mxu0 %v223
    %v296 = vpop.f32.mrb[0].mxu0
    %v297 = vadd.f32 0.0, %v296
    %v298 = vpop.f32.mrb[0].mxu0
    %299 = vdwg.mxu0
    %v300 = vadd.f32 %v208, %v292
    %v301 = vadd.f32 %v209, %v297
    %302 = vst.msk [vmem:[#allocation2] sm:$0xff] %vm31, %v300
    %303 = vst.msk [vmem:[#allocation2 + $0x8] sm:$0xff] %vm31, %v301
    // Predicated region
    $region22: #{tpu_custom_call.1} parent=1 // pred_check
      _
    $region23: #{tpu_custom_call.1} parent=1 // pred_check_branch
      %305 = sbr.rel (0) target = $region25
    $region24: #{tpu_custom_call.1} parent=1 // pred_region
      %s307 = ssub.s32 256, 256
      %308 = vsyncadd [#allocation3], %s307
      %s309 = sshll.u32 [#allocation2], 4
      %s310 = int_to_ptr.vmem [resolvable:$true] %s309
      %315 = dma.vmem_to_hbm [thread:$0]  %s310, 256, %s4, [#allocation3], 128, 128, 8
    $region25: #{tpu_custom_call.1} parent=1 // pred_fallthru
      _
    // Predicated region
    $region26: #{tpu_custom_call.1} parent=1 // pred_check
      _
    $region27: #{tpu_custom_call.1} parent=1 // pred_check_branch
      %317 = sbr.rel (0) target = $region29
    $region28: #{tpu_custom_call.1} parent=1 // pred_region
      %318 = dma.done [#allocation3], 256
    $region29: #{tpu_custom_call.1} parent=1 // pred_fallthru
      _
    %319 = vsyncpa [#allocation3], 1

</llo_original>
